<compile_context>
chip_gen: v5e
topology: v5e:2x2
jax: 0.10.0
libtpu: 0.0.40
codegen_flags: <defaults>
</compile_context>

<pallas_src>
import functools

import jax
import jax.numpy as jnp
from jax import lax
from jax.experimental import pallas as pl
from jax.experimental.pallas import tpu as pltpu

QUANT_MIN = -128          # qint8, per_channel_symmetric
QUANT_MAX = 127
CH_AXIS = 1               # NCHW channel axis
EPS = float(jnp.finfo(jnp.float32).eps)
_MIB = 1024 * 1024


def _vmem_capacity_bytes():
    """Generation-aware VMEM size (v5e/v6e: 128 MiB, v7x: 64 MiB)."""
    try:
        cap = int(getattr(pltpu.get_tpu_info(), "vmem_capacity_bytes", 0))
        if cap > 0:
            return cap
    except Exception:
        pass
    return 64 * _MIB      # conservative (v7x) fallback if the query fails


_VMEM_CAP = _vmem_capacity_bytes()
# Leave headroom below physical VMEM for compiler-internal scratch.
VMEM_LIMIT_BYTES = _VMEM_CAP - max(8 * _MIB, _VMEM_CAP // 8)
# Fake-quant keeps ~4 live block buffers (double-buffered in + out).
FQ_BLOCK_BYTES = _VMEM_CAP // 6
# Observer only double-buffers its input (outputs are (rows, 1) sized).
OBS_BLOCK_BYTES = _VMEM_CAP // 3
# Split of the observer's spatial range across a "parallel" grid axis so both
# v7x TensorCores participate even for a single row-block; harmless on 1-TC
# chips (same total tile count).
OBS_SPLITS = 2


def _round_up(x, m):
    return -(-x // m) * m


def _choose_tiles(n_rows, n_cols, itemsize, block_bytes):
    """Pick (row_tile, col_tile) for an (n_rows, n_cols) array.

    row_tile is a multiple of 8 or the full extent; col_tile is a multiple of
    128 or the full extent; row_tile * col_tile * itemsize ~<= block_bytes.
    """
    block_bytes = max(block_bytes, 8 * 128 * itemsize)
    min_col = n_cols if n_cols <= 128 else 128
    # Keep all rows in one block unless that alone blows the budget.
    if n_rows <= 8 or n_rows * min_col * itemsize <= block_bytes:
        tr = n_rows
    else:
        tr = max((block_bytes // (min_col * itemsize)) // 8 * 8, 8)
    # Columns: as wide as the budget allows (lane-dense, long DMA rows).
    if n_cols <= 128:
        tc = n_cols
    else:
        cap = max((block_bytes // (tr * itemsize)) // 128 * 128, 128)
        tc = min(_round_up(n_cols, 128), cap)
    return tr, tc


# ---------------------------------------------------------------------------
# Kernel 1: per-row (= per (n, c)) min/max reduction (observer hot path)
# ---------------------------------------------------------------------------
def _minmax_kernel(x_ref, min_ref, max_ref, *, hw, tc, tiles_per_split, has_tail):
    i = pl.program_id(2)                       # reduction axis (innermost)

    @pl.when(i == 0)
    def _init():
        tr = min_ref.shape[1]
        min_ref[0] = jnp.full((tr, 1), jnp.inf, jnp.float32)
        max_ref[0] = jnp.full((tr, 1), -jnp.inf, jnp.float32)

    x = x_ref[...]                             # (tr, tc), input dtype (exact for min/max)

    def _accumulate(x_for_min, x_for_max):
        min_ref[0] = jnp.minimum(
            min_ref[0],
            jnp.min(x_for_min, axis=-1, keepdims=True).astype(jnp.float32))
        max_ref[0] = jnp.maximum(
            max_ref[0],
            jnp.max(x_for_max, axis=-1, keepdims=True).astype(jnp.float32))

    if not has_tail:
        # HW is exactly covered: no masking anywhere.
        _accumulate(x, x)
    else:
        tile_start = (pl.program_id(1) * tiles_per_split + i) * tc
        fully_valid = (tile_start + tc) <= hw

        @pl.when(fully_valid)                  # interior tiles: unmasked fast path
        def _full():
            _accumulate(x, x)

        @pl.when(jnp.logical_not(fully_valid)) # ragged / over-covering tail only
        def _tail():
            col = tile_start + lax.broadcasted_iota(jnp.int32, x.shape, 1)
            valid = col < hw
            _accumulate(jnp.where(valid, x, jnp.array(jnp.inf, x.dtype)),
                        jnp.where(valid, x, jnp.array(-jnp.inf, x.dtype)))


def per_channel_minmax_rows(x2d, block_bytes=None):
    """x2d: [R, HW] -> partial (min, max), each [splits, R, 1] float32."""
    R, HW = x2d.shape
    block_bytes = OBS_BLOCK_BYTES if block_bytes is None else block_bytes
    tr, tc = _choose_tiles(R, HW, x2d.dtype.itemsize, block_bytes)
    n_row_blocks = pl.cdiv(R, tr)
    n_col_blocks = pl.cdiv(HW, tc)
    splits = min(OBS_SPLITS, n_col_blocks)
    tiles_per_split = -(-n_col_blocks // splits)
    has_tail = splits * tiles_per_split * tc > HW

    def x_index_map(r, s, i):
        # Clamp so over-covering split steps re-read a valid tile; their
        # contribution is discarded by the column mask in the kernel.
        return (r, jnp.minimum(s * tiles_per_split + i, n_col_blocks - 1))

    kernel = functools.partial(_minmax_kernel, hw=HW, tc=tc,
                               tiles_per_split=tiles_per_split, has_tail=has_tail)
    mn, mx = pl.pallas_call(
        kernel,
        out_shape=(jax.ShapeDtypeStruct((splits, R, 1), jnp.float32),
                   jax.ShapeDtypeStruct((splits, R, 1), jnp.float32)),
        grid_spec=pltpu.PrefetchScalarGridSpec(
            num_scalar_prefetch=0,
            grid=(n_row_blocks, splits, tiles_per_split),
            in_specs=[pl.BlockSpec((tr, tc), x_index_map)],
            out_specs=[pl.BlockSpec((1, tr, 1), lambda r, s, i: (s, r, 0)),
                       pl.BlockSpec((1, tr, 1), lambda r, s, i: (s, r, 0))]),
        compiler_params=pltpu.CompilerParams(
            dimension_semantics=("parallel", "parallel", "arbitrary"),
            vmem_limit_bytes=VMEM_LIMIT_BYTES),
    )(x2d)
    return mn, mx


# ---------------------------------------------------------------------------
# Kernel 2: per-row fake quantize (elementwise hot path, symmetric: zp == 0)
# ---------------------------------------------------------------------------
def _fake_quant_kernel(x_ref, scale_ref, inv_ref, o_ref, *, quant_min, quant_max):
    x = x_ref[...].astype(jnp.float32)              # (tr, tc)
    q = jnp.round(x * inv_ref[...])                 # round-half-even == torch nearbyint
    q = jnp.clip(q, float(quant_min), float(quant_max))
    o_ref[...] = (q * scale_ref[...]).astype(o_ref.dtype)
    # TODO(synk): affine (nonzero zero_point) path not implemented.


def fake_quantize_per_channel_rows(x2d, scale_rows, inv_rows, quant_min, quant_max,
                                   block_bytes=None):
    """x2d: [R, HW] (R = N*C rows), scale_rows/inv_rows: [R, 1] float32."""
    R, HW = x2d.shape
    block_bytes = FQ_BLOCK_BYTES if block_bytes is None else block_bytes
    tr, tc = _choose_tiles(R, HW, x2d.dtype.itemsize, block_bytes)
    grid = (pl.cdiv(R, tr), pl.cdiv(HW, tc))
    kernel = functools.partial(_fake_quant_kernel,
                               quant_min=quant_min, quant_max=quant_max)
    return pl.pallas_call(
        kernel,
        out_shape=jax.ShapeDtypeStruct((R, HW), x2d.dtype),
        grid_spec=pltpu.PrefetchScalarGridSpec(
            num_scalar_prefetch=0,
            grid=grid,
            in_specs=[pl.BlockSpec((tr, tc), lambda r, i: (r, i)),
                      pl.BlockSpec((tr, 1), lambda r, i: (r, 0)),
                      pl.BlockSpec((tr, 1), lambda r, i: (r, 0))],
            out_specs=pl.BlockSpec((tr, tc), lambda r, i: (r, i))),
        compiler_params=pltpu.CompilerParams(
            dimension_semantics=("parallel", "parallel"),
            vmem_limit_bytes=VMEM_LIMIT_BYTES),
    )(x2d, scale_rows, inv_rows)


# ---------------------------------------------------------------------------
# FakeQuantize module (JAX/Pallas port of the PyTorch FakeQuantize)
# ---------------------------------------------------------------------------
class FakeQuantize:
    """Per-channel-symmetric FakeQuantize with a running MinMax observer (qint8)."""

    def __init__(self, ch_axis=CH_AXIS, quant_min=QUANT_MIN, quant_max=QUANT_MAX,
                 observer_enabled=True, fake_quant_enabled=True,
                 _obs_block_bytes=None, _fq_block_bytes=None):
        self.ch_axis = ch_axis
        self.quant_min = quant_min
        self.quant_max = quant_max
        self.observer_enabled = observer_enabled
        self.fake_quant_enabled = fake_quant_enabled
        self._obs_block_bytes = _obs_block_bytes     # test/tuning overrides
        self._fq_block_bytes = _fq_block_bytes
        # buffers (same deterministic init as register_buffer in __init__)
        self.scale = jnp.ones((1,), jnp.float32)
        self.zero_point = jnp.zeros((1,), jnp.int32)
        # running per-channel min/max (PerChannelMinMaxObserver state)
        self.min_val = None
        self.max_val = None

    def _calculate_qparams(self, min_val, max_val):
        # PerChannelMinMaxObserver.calculate_qparams, symmetric qscheme, qint8.
        min_neg = jnp.minimum(min_val, 0.0)
        max_pos = jnp.maximum(max_val, 0.0)
        scale = jnp.maximum(-min_neg, max_pos) / (
            (self.quant_max - self.quant_min) / 2.0)
        scale = jnp.maximum(scale, EPS)
        zero_point = jnp.zeros_like(scale, dtype=jnp.int32)  # symmetric -> 0
        return scale, zero_point

    def __call__(self, x):
        # x: NCHW, ch_axis = 1
        N, C, H, W = x.shape
        R = N * C
        x2d = x.reshape(R, H * W)      # free view: rows = (n, c), lanes = spatial

        if self.observer_enabled:
            mn_p, mx_p = per_channel_minmax_rows(x2d, self._obs_block_bytes)
            mn = mn_p.min(axis=0).reshape(N, C).min(axis=0)   # tiny JAX combine
            mx = mx_p.max(axis=0).reshape(N, C).max(axis=0)
            if self.min_val is not None:           # running observer state
                mn = jnp.minimum(mn, self.min_val)
                mx = jnp.maximum(mx, self.max_val)
            self.min_val, self.max_val = mn, mx
            scale, zero_point = self._calculate_qparams(mn, mx)
            self.scale = scale                      # buffer resize + copy_
            self.zero_point = zero_point

        if self.fake_quant_enabled:
            # Broadcast handles the default (1,)-shaped buffer when the
            # observer has never run.
            scale = jnp.broadcast_to(
                jnp.asarray(self.scale, jnp.float32).reshape(-1), (C,))
            inv_scale = 1.0 / scale                 # hoisted: C scalars, once
            scale_rows = jnp.broadcast_to(scale, (N, C)).reshape(R, 1)
            inv_rows = jnp.broadcast_to(inv_scale, (N, C)).reshape(R, 1)
            out2d = fake_quantize_per_channel_rows(
                x2d, scale_rows, inv_rows, self.quant_min, self.quant_max,
                self._fq_block_bytes)
            x = out2d.reshape(N, C, H, W)
        return x


# ---------------------------------------------------------------------------
# Pure-JAX reference for correctness checks
# ---------------------------------------------------------------------------
def _ref_forward(x, quant_min, quant_max, ch_axis):
    axes = tuple(a for a in range(x.ndim) if a != ch_axis)
    xf = x.astype(jnp.float32)
    mn = jnp.min(xf, axis=axes)
    mx = jnp.max(xf, axis=axes)
    scale = jnp.maximum(jnp.maximum(-jnp.minimum(mn, 0.0), jnp.maximum(mx, 0.0)) /
                        ((quant_max - quant_min) / 2.0), EPS)
    bshape = [1] * x.ndim
    bshape[ch_axis] = -1
    s = scale.reshape(bshape)
    inv = (1.0 / scale).reshape(bshape)
    q = jnp.clip(jnp.round(xf * inv), quant_min, quant_max)
    return (q * s).astype(x.dtype)


if __name__ == "__main__":
    # 1) Primary shape (NCHW, ch_axis=1).  HW = 256 (128-multiple), R = 8 rows.
    key = jax.random.PRNGKey(0)
    x = jax.random.normal(key, (2, 4, 16, 16), dtype=jnp.float32) * 3.0
    out = jax.block_until_ready(FakeQuantize()(x))
    ref = _ref_forward(x, QUANT_MIN, QUANT_MAX, CH_AXIS)
    assert out.shape == x.shape and out.dtype == x.dtype
    assert jnp.allclose(out, ref, atol=1e-5, rtol=1e-5), "mismatch vs reference"

    # 2) Ragged spatial size (HW = 200, not a 128-multiple) and tiny C/R.
    x2 = jax.random.normal(jax.random.PRNGKey(1), (1, 3, 10, 20),
                           dtype=jnp.float32) * 2.0
    out2 = jax.block_until_ready(FakeQuantize()(x2))
    ref2 = _ref_forward(x2, QUANT_MIN, QUANT_MAX, CH_AXIS)
    assert jnp.allclose(out2, ref2, atol=1e-5, rtol=1e-5), "mismatch (ragged HW)"

    # 3) Force tiny block budgets to exercise multi-tile grids, the observer
    #    2-way spatial split, index clamping and masked-tail paths at small size.
    x3 = jax.random.normal(jax.random.PRNGKey(2), (1, 4, 45, 100),
                           dtype=jnp.float32) * 1.5
    fq3 = FakeQuantize(_obs_block_bytes=8 * 1024, _fq_block_bytes=8 * 1024)
    out3 = jax.block_until_ready(fq3(x3))
    ref3 = _ref_forward(x3, QUANT_MIN, QUANT_MAX, CH_AXIS)
    assert jnp.allclose(out3, ref3, atol=1e-5, rtol=1e-5), "mismatch (tiled path)"

    # 4) bf16 input path (kernels keep the input dtype; min/max exact in bf16).
    x4 = (jax.random.normal(jax.random.PRNGKey(3), (2, 8, 8, 16),
                            dtype=jnp.float32) * 2.0).astype(jnp.bfloat16)
    out4 = jax.block_until_ready(FakeQuantize()(x4))
    ref4 = _ref_forward(x4, QUANT_MIN, QUANT_MAX, CH_AXIS)
    assert out4.dtype == x4.dtype
    assert jnp.allclose(out4.astype(jnp.float32), ref4.astype(jnp.float32),
                        atol=2e-2), "mismatch (bf16 path)"

    print("KERNEL_OK")
</pallas_src>

<mosaic_0001>
module attributes {stable_mosaic.version = 11 : i64} {
  func.func @_minmax_kernel(%arg0: i32, %arg1: i32, %arg2: i32, %arg3: memref<8x256xf32, #tpu.memory_space<vmem>>, %arg4: memref<1x8x1xf32, #tpu.memory_space<vmem>>, %arg5: memref<1x8x1xf32, #tpu.memory_space<vmem>>) attributes {dimension_semantics = [#tpu.dimension_semantics<parallel>, #tpu.dimension_semantics<parallel>, #tpu.dimension_semantics<arbitrary>], iteration_bounds = array<i64: 1, 1, 1>, scalar_prefetch = 0 : i64, scratch_operands = 0 : i64, tpu.core_type = #tpu.core_type<tc>, window_params = [{transform_indices = @transform_0, window_bounds = array<i64: 8, 256>}, {transform_indices = @transform_1, window_bounds = array<i64: 1, 8, 1>}, {transform_indices = @transform_2, window_bounds = array<i64: 1, 8, 1>}]} {
    %c0_i32 = arith.constant 0 : i32
    %0 = arith.cmpi eq, %arg2, %c0_i32 : i32
    %1 = arith.extui %0 : i1 to i32
    %c0_i32_0 = arith.constant 0 : i32
    %2 = arith.cmpi ne, %1, %c0_i32_0 : i32
    scf.if %2 {
      %cst_15 = arith.constant 0x7F800000 : f32
      %20 = vector.broadcast %cst_15 : f32 to vector<8x1xf32>
      %c0_16 = arith.constant 0 : index
      %c0_17 = arith.constant 0 : index
      %c0_18 = arith.constant 0 : index
      %21 = vector.load %arg4[%c0_16, %c0_17, %c0_18] : memref<1x8x1xf32, #tpu.memory_space<vmem>>, vector<1x8x1xf32>
      %22 = vector.shape_cast %21 : vector<1x8x1xf32> to vector<8x1xf32>
      %23 = vector.shape_cast %20 : vector<8x1xf32> to vector<1x8x1xf32>
      tpu.vector_store %arg4[%c0_16, %c0_17, %c0_18], %23 {strides = array<i32>} : memref<1x8x1xf32, #tpu.memory_space<vmem>>, vector<1x8x1xf32>,
      %cst_19 = arith.constant 0xFF800000 : f32
      %24 = vector.broadcast %cst_19 : f32 to vector<8x1xf32>
      %c0_20 = arith.constant 0 : index
      %c0_21 = arith.constant 0 : index
      %c0_22 = arith.constant 0 : index
      %25 = vector.load %arg5[%c0_20, %c0_21, %c0_22] : memref<1x8x1xf32, #tpu.memory_space<vmem>>, vector<1x8x1xf32>
      %26 = vector.shape_cast %25 : vector<1x8x1xf32> to vector<8x1xf32>
      %27 = vector.shape_cast %24 : vector<8x1xf32> to vector<1x8x1xf32>
      tpu.vector_store %arg5[%c0_20, %c0_21, %c0_22], %27 {strides = array<i32>} : memref<1x8x1xf32, #tpu.memory_space<vmem>>, vector<1x8x1xf32>,
    } else {
    }
    %c0 = arith.constant 0 : index
    %c0_1 = arith.constant 0 : index
    %3 = vector.load %arg3[%c0, %c0_1] : memref<8x256xf32, #tpu.memory_space<vmem>>, vector<8x256xf32>
    %c0_2 = arith.constant 0 : index
    %c0_3 = arith.constant 0 : index
    %c0_4 = arith.constant 0 : index
    %4 = vector.load %arg4[%c0_2, %c0_3, %c0_4] : memref<1x8x1xf32, #tpu.memory_space<vmem>>, vector<1x8x1xf32>
    %5 = vector.shape_cast %4 : vector<1x8x1xf32> to vector<8x1xf32>
    %cst = arith.constant dense<0x7F800000> : vector<8xf32>
    %6 = vector.multi_reduction <minimumf>, %3, %cst [1] : vector<8x256xf32> to vector<8xf32>
    %7 = vector.shape_cast %6 : vector<8xf32> to vector<8x1xf32>
    %8 = arith.minimumf %5, %7 : vector<8x1xf32>
    %c0_5 = arith.constant 0 : index
    %c0_6 = arith.constant 0 : index
    %c0_7 = arith.constant 0 : index
    %9 = vector.load %arg4[%c0_5, %c0_6, %c0_7] : memref<1x8x1xf32, #tpu.memory_space<vmem>>, vector<1x8x1xf32>
    %10 = vector.shape_cast %9 : vector<1x8x1xf32> to vector<8x1xf32>
    %11 = vector.shape_cast %8 : vector<8x1xf32> to vector<1x8x1xf32>
    tpu.vector_store %arg4[%c0_5, %c0_6, %c0_7], %11 {strides = array<i32>} : memref<1x8x1xf32, #tpu.memory_space<vmem>>, vector<1x8x1xf32>,
    %c0_8 = arith.constant 0 : index
    %c0_9 = arith.constant 0 : index
    %c0_10 = arith.constant 0 : index
    %12 = vector.load %arg5[%c0_8, %c0_9, %c0_10] : memref<1x8x1xf32, #tpu.memory_space<vmem>>, vector<1x8x1xf32>
    %13 = vector.shape_cast %12 : vector<1x8x1xf32> to vector<8x1xf32>
    %cst_11 = arith.constant dense<0xFF800000> : vector<8xf32>
    %14 = vector.multi_reduction <maximumf>, %3, %cst_11 [1] : vector<8x256xf32> to vector<8xf32>
    %15 = vector.shape_cast %14 : vector<8xf32> to vector<8x1xf32>
    %16 = arith.maximumf %13, %15 : vector<8x1xf32>
    %c0_12 = arith.constant 0 : index
    %c0_13 = arith.constant 0 : index
    %c0_14 = arith.constant 0 : index
    %17 = vector.load %arg5[%c0_12, %c0_13, %c0_14] : memref<1x8x1xf32, #tpu.memory_space<vmem>>, vector<1x8x1xf32>
    %18 = vector.shape_cast %17 : vector<1x8x1xf32> to vector<8x1xf32>
    %19 = vector.shape_cast %16 : vector<8x1xf32> to vector<1x8x1xf32>
    tpu.vector_store %arg5[%c0_12, %c0_13, %c0_14], %19 {strides = array<i32>} : memref<1x8x1xf32, #tpu.memory_space<vmem>>, vector<1x8x1xf32>,
    return
  }
  func.func @transform_0(%arg0: i32, %arg1: i32, %arg2: i32) -> (i32, i32) {
    %c1_i32 = arith.constant 1 : i32
    %0 = arith.muli %arg1, %c1_i32 : i32
    %1 = arith.addi %0, %arg2 : i32
    %c0_i32 = arith.constant 0 : i32
    %2 = arith.minsi %1, %c0_i32 : i32
    %c0_i32_0 = arith.constant 0 : i32
    return %arg0, %2 : i32, i32
  }
  func.func @transform_1(%arg0: i32, %arg1: i32, %arg2: i32) -> (i32, i32, i32) {
    %c0_i32 = arith.constant 0 : i32
    %c0_i32_0 = arith.constant 0 : i32
    return %arg1, %arg0, %c0_i32 : i32, i32, i32
  }
  func.func @transform_2(%arg0: i32, %arg1: i32, %arg2: i32) -> (i32, i32, i32) {
    %c0_i32 = arith.constant 0 : i32
    %c0_i32_0 = arith.constant 0 : i32
    return %arg1, %arg0, %c0_i32 : i32, i32, i32
  }
}

</mosaic_0001>

<llo_original>
// kernel: tpu_custom_call.1
$region0: #{tpu_custom_call.1}
  #allocation0 [shape = 'u32[]', space=smem, size = 0x4, offset = 0x4, fixed_abs, tag = 'smem constant byte address 0x4 - core index']
  #allocation1 [shape = 'u32[72,128]{1,0:T(1,128)}', space=vmem, size = 0x9000, scoped, tag = 'internal scratch']
  %s0 = inlined_call_operand.hbm [shape: f32[8,256], index: 0, kind: input, shape index: {}]
  %s1 = inlined_call_operand.vmem [shape: f32[1,8,1], index: 1, kind: output, shape index: {0}]
  %s2 = inlined_call_operand.vmem [shape: f32[1,8,1], index: 2, kind: output, shape index: {1}]
  %3 = xla_tuple %s1, %s2
  %s4 = sld [smem:[#allocation0]]
  $region30: #{tpu_custom_call.1} parent=0
    _
  %s6 = ssub.s32 1, %s4
  %s7 = scalar_select 0, %s6, %s4
  $region1: #{tpu_custom_call.1} parent=0
    #allocation2 [shape = 'u8[8192]{0}', space=vmem, size = 0x2000, scoped, tag = 'input window, operand 0, single buffered']
    #allocation3 [shape = 's32[1]{0}', space=sflag, size = 0x4, scoped, tag = 'scoped memory for tpu_custom_call.1']
    %8 = vsyncpa [#allocation3], 0
    // Predicated region
    $region2: #{tpu_custom_call.1} parent=1 // pred_check
      _
    $region3: #{tpu_custom_call.1} parent=1 // pred_check_branch
      %10 = sbr.rel (0) target = $region5
    $region4: #{tpu_custom_call.1} parent=1 // pred_region
      %s11 = sadd.s32 0, 0
      %p12 = scmp.lt.s32.totalorder %s11, 0
      %s13 = scalar_select %p12, %s11, 0
      %s14 = smul.u32 2, %s13
      %16 = vsyncadd [#allocation3], 0
      %s17 = smul.addr %s14, 8
      %s18 = scalar_lea.hbm %s0, %s17
      %s20 = sshll.u32 %s18, 4
      %s21 = int_to_ptr.hbm [resolvable:$true] %s20
      %s22 = sshll.u32 [#allocation2], 4
      %s23 = int_to_ptr.vmem [resolvable:$true] %s22
      %25 = dma.hbm_to_vmem [thread:$0]  %s21, 256, %s23, [#allocation3]
    $region5: #{tpu_custom_call.1} parent=1 // pred_fallthru
      _
    // Predicated region
    $region6: #{tpu_custom_call.1} parent=1 // pred_check
      _
    $region7: #{tpu_custom_call.1} parent=1 // pred_check_branch
      %27 = sbr.rel (0) target = $region9
    $region8: #{tpu_custom_call.1} parent=1 // pred_region
      %29 = dma.done [#allocation3], 256
    $region9: #{tpu_custom_call.1} parent=1 // pred_fallthru
      _
    %s30 = sadd.s32 0, 0
    %p31 = scmp.lt.s32.totalorder %s30, 0
    %s32 = scalar_select %p31, %s30, 0
    %s33 = smul.u32 2, %s32
    %p34 = scmp.eq.s32.totalorder 0, 0
    // Predicated region
    $region10: #{tpu_custom_call.1} parent=1 // pred_check
      %p35 = pneg %p34
    $region11: #{tpu_custom_call.1} parent=1 // pred_check_branch
      %37 = sbr.rel (%p35) target = $region13
    $region12: #{tpu_custom_call.1} parent=1 // pred_region
      %vm38 = vcmask 7168
      %39 = vst.msk [vmem:[%s1] sm:$0xff] %vm38, inf
      %40 = vst.msk [vmem:[%s2] sm:$0xff] %vm38, -inf
    $region13: #{tpu_custom_call.1} parent=1 // pred_fallthru
      _
    %v41 = vld [vmem:[#allocation2] sm:$0xff]
    %v42 = vld [vmem:[#allocation2 + $0x8] sm:$0xff]
    %v43 = vld [vmem:[%s1] sm:$0xff]
    %v44 = vmin.f32 %v41, %v42
    %45 = vmin.xlane.f32.xlu0 %v44
    %v46 = vpop.xlane.xlu0 %45
    %v47 = vmin.f32 %v43, %v46
    %vm48 = vcmask 7168
    %49 = vst.msk [vmem:[%s1] sm:$0xff] %vm48, %v47
    %v50 = vld [vmem:[%s2] sm:$0xff]
    %v51 = vmax.f32 %v41, %v42
    %52 = vmax.xlane.f32.xlu0 %v51
    %v53 = vpop.xlane.xlu0 %52
    %v54 = vmax.f32 %v50, %v53
    %55 = vst.msk [vmem:[%s2] sm:$0xff] %vm48, %v54
    // Predicated region
    $region14: #{tpu_custom_call.1} parent=1 // pred_check
      _
    $region15: #{tpu_custom_call.1} parent=1 // pred_check_branch
      %57 = sbr.rel (0) target = $region17
    $region16: #{tpu_custom_call.1} parent=1 // pred_region
      _
    $region17: #{tpu_custom_call.1} parent=1 // pred_fallthru
      _
    // Predicated region
    $region18: #{tpu_custom_call.1} parent=1 // pred_check
      _
    $region19: #{tpu_custom_call.1} parent=1 // pred_check_branch
      %59 = sbr.rel (0) target = $region21
    $region20: #{tpu_custom_call.1} parent=1 // pred_region
      _
    $region21: #{tpu_custom_call.1} parent=1 // pred_fallthru
      _
    // Predicated region
    $region22: #{tpu_custom_call.1} parent=1 // pred_check
      _
    $region23: #{tpu_custom_call.1} parent=1 // pred_check_branch
      %61 = sbr.rel (0) target = $region25
    $region24: #{tpu_custom_call.1} parent=1 // pred_region
      _
    $region25: #{tpu_custom_call.1} parent=1 // pred_fallthru
      _
    // Predicated region
    $region26: #{tpu_custom_call.1} parent=1 // pred_check
      _
    $region27: #{tpu_custom_call.1} parent=1 // pred_check_branch
      %63 = sbr.rel (0) target = $region29
    $region28: #{tpu_custom_call.1} parent=1 // pred_region
      _
    $region29: #{tpu_custom_call.1} parent=1 // pred_fallthru
      _
    %64 = vsyncpa [#allocation3], 1

</llo_original>
